<compile_context>
chip_gen: v6e
topology: v6e:2x2x1
jax: 0.10.0
libtpu: 0.0.40
codegen_flags: <defaults>
</compile_context>

<pallas_src>
import math

import jax
import jax.numpy as jnp
from jax.experimental import pallas as pl
from jax.experimental.pallas import tpu as pltpu


def _round_up(v, m):
    return (v + m - 1) // m * m


def _gaussian_encoding_kernel(x_ref, w_ref, a_ref, p_ref, o_ref):
    # x_ref: [TP, 2*dims]    pair-packed coords (rows 2r and 2r+1)   (VMEM)
    # w_ref: [2*dims, 2*emb] block-diagonal projection, 2*pi folded  (VMEM, resident)
    # a_ref: [1, 2*emb]      avals tiled 4x (sin/cos x pair)         (VMEM, resident)
    # p_ref: [1, 2*emb]      phase row: 0 for sin lanes, pi/2 for cos(VMEM, resident)
    # o_ref: [TP, 2*emb]     lane-dense packed output                (VMEM)
    x = x_ref[...]
    w = w_ref[...]
    d2 = w.shape[0]

    if d2 <= 8:
        # dims <= 4: full-width VPU broadcast FMAs; the MXU would be <2%
        # utilized with such a tiny contraction dim.
        # TODO(synk): confirm in the MLIR that the [TP,1]x[1,2E] broadcasts
        # lower to cheap sublane-broadcast loads rather than XLU shuffles.
        ang = p_ref[...] + x[:, 0:1] * w[0:1, :]
        for d in range(1, d2):
            ang = ang + x[:, d:d + 1] * w[d:d + 1, :]
    else:
        # Larger reduction dim: use the MXU, then add the phase row.
        ang = jnp.dot(x, w, preferred_element_type=jnp.float32) + p_ref[...]

    # cos(t) == sin(t + pi/2): one full-width sin covers both halves (EUP),
    # followed by a single lane-dense full-width store.
    o_ref[...] = (a_ref[...] * jnp.sin(ang)).astype(o_ref.dtype)


def gaussian_encoding(x, bvals, avals, *, row_tile=8192, out_dtype=jnp.float32):
    """x: [..., dims]; bvals: [emb/2, dims]; avals: [emb/2].  Returns [..., emb]."""
    dims = x.shape[-1]
    half = bvals.shape[0]
    emb = 2 * half
    d2 = 2 * dims          # pair-packed input width
    e2 = 2 * emb           # pair-packed (lane-dense) output width
    lead = x.shape[:-1]
    n = math.prod(lead) if lead else 1

    x_flat = jnp.asarray(x, jnp.float32).reshape(n, dims)

    # ---- tile / grid selection over pair rows -------------------------------
    n_pairs = max(1, (n + 1) // 2)
    tp = min(max(8, row_tile // 2), _round_up(n_pairs, 8))
    tp = _round_up(tp, 8)
    grid = -(-n_pairs // tp)
    # v7x megacore: prefer an even number of grid steps when multi-step.
    if grid > 1 and grid % 2 == 1:
        grid += 1
        tp = _round_up(-(-n_pairs // grid), 8)
        grid = -(-n_pairs // tp)
    n_pairs_pad = grid * tp
    n_pad = 2 * n_pairs_pad

    if n_pad != n:
        x_flat = jnp.pad(x_flat, ((0, n_pad - n), (0, 0)))
    x_pairs = x_flat.reshape(n_pairs_pad, d2)   # row r = [x[2r], x[2r+1]]

    # ---- resident weight / scale / phase rows -------------------------------
    # Fold 2*pi into the projection; widen to [dims, emb] (sin|cos share the
    # angle), then lay out block-diagonally for the pair packing.
    bT = jnp.asarray(bvals, jnp.float32).T * (2.0 * math.pi)       # [dims, half]
    b_row = jnp.concatenate([bT, bT], axis=1)                       # [dims, emb]
    zero = jnp.zeros_like(b_row)
    w = jnp.concatenate(
        [jnp.concatenate([b_row, zero], axis=1),                    # coords of row 2r
         jnp.concatenate([zero, b_row], axis=1)],                   # coords of row 2r+1
        axis=0)                                                     # [2*dims, 2*emb]

    a1 = jnp.asarray(avals, jnp.float32)
    a_row = jnp.tile(a1, 4).reshape(1, e2)                          # [1, 2*emb]

    phase_half = jnp.concatenate(
        [jnp.zeros((half,), jnp.float32),
         jnp.full((half,), 0.5 * math.pi, jnp.float32)])
    p_row = jnp.tile(phase_half, 2).reshape(1, e2)                  # [1, 2*emb]

    out_itemsize = jnp.dtype(out_dtype).itemsize
    cost = pl.CostEstimate(
        flops=n_pairs_pad * e2 * (2 * d2 + 2),
        transcendentals=n_pairs_pad * e2,
        bytes_accessed=(n_pairs_pad * d2 * 4
                        + n_pairs_pad * e2 * out_itemsize
                        + d2 * e2 * 4 + 2 * e2 * 4),
    )

    out_packed = pl.pallas_call(
        _gaussian_encoding_kernel,
        out_shape=jax.ShapeDtypeStruct((n_pairs_pad, e2), out_dtype),
        grid_spec=pltpu.PrefetchScalarGridSpec(
            num_scalar_prefetch=0,
            grid=(grid,),
            in_specs=[
                pl.BlockSpec((tp, d2), lambda i: (i, 0)),
                pl.BlockSpec((d2, e2), lambda i: (0, 0)),   # resident
                pl.BlockSpec((1, e2), lambda i: (0, 0)),    # resident
                pl.BlockSpec((1, e2), lambda i: (0, 0)),    # resident
            ],
            out_specs=pl.BlockSpec((tp, e2), lambda i: (i, 0)),
        ),
        compiler_params=pltpu.CompilerParams(
            dimension_semantics=("parallel",),
            vmem_limit_bytes=32 * 1024 * 1024,
        ),
        cost_estimate=cost,
    )(x_pairs, w, a_row, p_row)

    # Free contiguous un-pack: [N/2, 2*emb] -> [N, emb], drop pad rows.
    out = out_packed.reshape(n_pad, emb)[:n]
    return out.reshape(*lead, emb)


if __name__ == "__main__":
    # Module config (gaussian=True branch): embedding_size=64, scale=10, dims=2
    embedding_size = 64
    scale = 10.0
    dims = 2

    key = jax.random.PRNGKey(0)
    k_b, k_x = jax.random.split(key)

    # Deterministic parameter init (same shapes as the torch module).
    bvals = jax.random.normal(k_b, (embedding_size // 2, dims),
                              dtype=jnp.float32) * scale
    avals = jnp.ones((embedding_size // 2,), dtype=jnp.float32)

    # Example input: batch=2, seq=8, coord dims=2  -> output [2, 8, 64]
    x = jax.random.uniform(k_x, (2, 8, dims), dtype=jnp.float32)

    out = jax.block_until_ready(gaussian_encoding(x, bvals, avals))

    # Pure-JAX reference (torch.cat([a*sin(2pi xB^T), a*cos(2pi xB^T)], -1)).
    proj = x @ bvals.T
    ref = jnp.concatenate(
        [avals * jnp.sin(2.0 * jnp.pi * proj),
         avals * jnp.cos(2.0 * jnp.pi * proj)],
        axis=-1,
    )
    assert out.shape == (2, 8, embedding_size)
    # Tolerance accounts for folding 2*pi into bvals and cos = sin(x + pi/2)
    # (different f32 rounding order than the reference; math stays f32).
    assert jnp.allclose(out, ref, atol=1e-3, rtol=1e-3), "f32 mismatch"

    # bf16-output path (halves HBM writes of this write-bound kernel); math
    # stays f32, only the final store is cast, so tolerance is ~bf16 epsilon.
    out_bf16 = jax.block_until_ready(
        gaussian_encoding(x, bvals, avals, out_dtype=jnp.bfloat16))
    assert out_bf16.shape == (2, 8, embedding_size)
    assert jnp.allclose(out_bf16.astype(jnp.float32), ref,
                        atol=3e-2, rtol=3e-2), "bf16 mismatch"

    print("KERNEL_OK")
</pallas_src>

<mosaic_0001>
module attributes {stable_mosaic.version = 11 : i64} {
  func.func @_gaussian_encoding_kernel(%arg0: i32, %arg1: memref<8x4xf32, #tpu.memory_space<vmem>>, %arg2: memref<4x128xf32, #tpu.memory_space<vmem>>, %arg3: memref<1x128xf32, #tpu.memory_space<vmem>>, %arg4: memref<1x128xf32, #tpu.memory_space<vmem>>, %arg5: memref<8x128xf32, #tpu.memory_space<vmem>>) attributes {dimension_semantics = [#tpu.dimension_semantics<parallel>], iteration_bounds = array<i64: 1>, scalar_prefetch = 0 : i64, scratch_operands = 0 : i64, tpu.core_type = #tpu.core_type<tc>, window_params = [{transform_indices = @transform_0, window_bounds = array<i64: 8, 4>}, {pipeline_mode = #tpu.pipeline_mode<synchronous>, transform_indices = @transform_1, window_bounds = array<i64: 4, 128>}, {pipeline_mode = #tpu.pipeline_mode<synchronous>, transform_indices = @transform_2, window_bounds = array<i64: 1, 128>}, {pipeline_mode = #tpu.pipeline_mode<synchronous>, transform_indices = @transform_3, window_bounds = array<i64: 1, 128>}, {transform_indices = @transform_4, window_bounds = array<i64: 8, 128>}]} {
    %c0 = arith.constant 0 : index
    %c0_0 = arith.constant 0 : index
    %0 = vector.load %arg1[%c0, %c0_0] : memref<8x4xf32, #tpu.memory_space<vmem>>, vector<8x4xf32>
    %c0_1 = arith.constant 0 : index
    %c0_2 = arith.constant 0 : index
    %1 = vector.load %arg2[%c0_1, %c0_2] : memref<4x128xf32, #tpu.memory_space<vmem>>, vector<4x128xf32>
    %c0_3 = arith.constant 0 : index
    %c0_4 = arith.constant 0 : index
    %2 = vector.load %arg4[%c0_3, %c0_4] : memref<1x128xf32, #tpu.memory_space<vmem>>, vector<1x128xf32>
    %3 = vector.extract_strided_slice %0 {offsets = [0, 0], sizes = [8, 1], strides = [1, 1]} : vector<8x4xf32> to vector<8x1xf32>
    %4 = vector.extract_strided_slice %1 {offsets = [0, 0], sizes = [1, 128], strides = [1, 1]} : vector<4x128xf32> to vector<1x128xf32>
    %5 = vector.broadcast %3 : vector<8x1xf32> to vector<8x128xf32>
    %6 = vector.broadcast %4 : vector<1x128xf32> to vector<8x128xf32>
    %7 = arith.mulf %5, %6 : vector<8x128xf32>
    %8 = vector.broadcast %2 : vector<1x128xf32> to vector<8x128xf32>
    %9 = arith.addf %8, %7 : vector<8x128xf32>
    %10 = vector.extract_strided_slice %0 {offsets = [0, 1], sizes = [8, 1], strides = [1, 1]} : vector<8x4xf32> to vector<8x1xf32>
    %11 = vector.extract_strided_slice %1 {offsets = [1, 0], sizes = [1, 128], strides = [1, 1]} : vector<4x128xf32> to vector<1x128xf32>
    %12 = vector.broadcast %10 : vector<8x1xf32> to vector<8x128xf32>
    %13 = vector.broadcast %11 : vector<1x128xf32> to vector<8x128xf32>
    %14 = arith.mulf %12, %13 : vector<8x128xf32>
    %15 = arith.addf %9, %14 : vector<8x128xf32>
    %16 = vector.extract_strided_slice %0 {offsets = [0, 2], sizes = [8, 1], strides = [1, 1]} : vector<8x4xf32> to vector<8x1xf32>
    %17 = vector.extract_strided_slice %1 {offsets = [2, 0], sizes = [1, 128], strides = [1, 1]} : vector<4x128xf32> to vector<1x128xf32>
    %18 = vector.broadcast %16 : vector<8x1xf32> to vector<8x128xf32>
    %19 = vector.broadcast %17 : vector<1x128xf32> to vector<8x128xf32>
    %20 = arith.mulf %18, %19 : vector<8x128xf32>
    %21 = arith.addf %15, %20 : vector<8x128xf32>
    %22 = vector.extract_strided_slice %0 {offsets = [0, 3], sizes = [8, 1], strides = [1, 1]} : vector<8x4xf32> to vector<8x1xf32>
    %23 = vector.extract_strided_slice %1 {offsets = [3, 0], sizes = [1, 128], strides = [1, 1]} : vector<4x128xf32> to vector<1x128xf32>
    %24 = vector.broadcast %22 : vector<8x1xf32> to vector<8x128xf32>
    %25 = vector.broadcast %23 : vector<1x128xf32> to vector<8x128xf32>
    %26 = arith.mulf %24, %25 : vector<8x128xf32>
    %27 = arith.addf %21, %26 : vector<8x128xf32>
    %c0_5 = arith.constant 0 : index
    %c0_6 = arith.constant 0 : index
    %28 = vector.load %arg3[%c0_5, %c0_6] : memref<1x128xf32, #tpu.memory_space<vmem>>, vector<1x128xf32>
    %29 = math.sin %27 : vector<8x128xf32>
    %30 = vector.broadcast %28 : vector<1x128xf32> to vector<8x128xf32>
    %31 = arith.mulf %30, %29 : vector<8x128xf32>
    %c0_7 = arith.constant 0 : index
    %c0_8 = arith.constant 0 : index
    %32 = vector.load %arg5[%c0_7, %c0_8] : memref<8x128xf32, #tpu.memory_space<vmem>>, vector<8x128xf32>
    tpu.vector_store %arg5[%c0_7, %c0_8], %31 {strides = array<i32>} : memref<8x128xf32, #tpu.memory_space<vmem>>, vector<8x128xf32>,
    return
  }
  func.func @transform_0(%arg0: i32) -> (i32, i32) {
    %c0_i32 = arith.constant 0 : i32
    %c0_i32_0 = arith.constant 0 : i32
    return %arg0, %c0_i32 : i32, i32
  }
  func.func @transform_1(%arg0: i32) -> (i32, i32) {
    %c0_i32 = arith.constant 0 : i32
    %c0_i32_0 = arith.constant 0 : i32
    %c0_i32_1 = arith.constant 0 : i32
    return %c0_i32, %c0_i32_0 : i32, i32
  }
  func.func @transform_2(%arg0: i32) -> (i32, i32) {
    %c0_i32 = arith.constant 0 : i32
    %c0_i32_0 = arith.constant 0 : i32
    %c0_i32_1 = arith.constant 0 : i32
    return %c0_i32, %c0_i32_0 : i32, i32
  }
  func.func @transform_3(%arg0: i32) -> (i32, i32) {
    %c0_i32 = arith.constant 0 : i32
    %c0_i32_0 = arith.constant 0 : i32
    %c0_i32_1 = arith.constant 0 : i32
    return %c0_i32, %c0_i32_0 : i32, i32
  }
  func.func @transform_4(%arg0: i32) -> (i32, i32) {
    %c0_i32 = arith.constant 0 : i32
    %c0_i32_0 = arith.constant 0 : i32
    return %arg0, %c0_i32 : i32, i32
  }
}

</mosaic_0001>

<llo_original>
// kernel: tpu_custom_call.1
$region0: #{tpu_custom_call.1}
  #allocation0 [shape = 'u32[]', space=smem, size = 0x4, offset = 0x4, fixed_abs, tag = 'smem constant byte address 0x4 - core index']
  #allocation1 [shape = 'u32[144,128]{1,0:T(1,128)}', space=vmem, size = 0x12000, scoped, tag = 'internal scratch']
  %s0 = inlined_call_operand.vmem [shape: f32[8,4], index: 0, kind: input, shape index: {}]
  %s1 = inlined_call_operand.vmem [shape: f32[4,128], index: 1, kind: input, shape index: {}]
  %s2 = inlined_call_operand.vmem [shape: f32[1,128], index: 2, kind: input, shape index: {}]
  %s3 = inlined_call_operand.vmem [shape: f32[1,128], index: 3, kind: input, shape index: {}]
  %s4 = inlined_call_operand.hbm [shape: f32[8,128], index: 4, kind: output, shape index: {}]
  %s5 = sld [smem:[#allocation0]]
  $region26: #{tpu_custom_call.1} parent=0
    _
  %s7 = ssub.s32 1, %s5
  %s8 = scalar_select 0, %s7, %s5
  $region1: #{tpu_custom_call.1} parent=0
    #allocation2 [shape = 'u8[4096]{0}', space=vmem, size = 0x1000, scoped, tag = 'output window, operand 0, single buffered']
    #allocation3 [shape = 's32[1]{0}', space=sflag, size = 0x4, scoped, tag = 'scoped memory for tpu_custom_call.1']
    %9 = vsyncpa [#allocation3], 0
    // Predicated region
    $region2: #{tpu_custom_call.1} parent=1 // pred_check
      _
    $region3: #{tpu_custom_call.1} parent=1 // pred_check_branch
      %11 = sbr.rel (0) target = $region5
    $region4: #{tpu_custom_call.1} parent=1 // pred_region
      _
    $region5: #{tpu_custom_call.1} parent=1 // pred_fallthru
      _
    // Predicated region
    $region6: #{tpu_custom_call.1} parent=1 // pred_check
      _
    $region7: #{tpu_custom_call.1} parent=1 // pred_check_branch
      %13 = sbr.rel (0) target = $region9
    $region8: #{tpu_custom_call.1} parent=1 // pred_region
      _
    $region9: #{tpu_custom_call.1} parent=1 // pred_fallthru
      _
    // Predicated region
    $region10: #{tpu_custom_call.1} parent=1 // pred_check
      _
    $region11: #{tpu_custom_call.1} parent=1 // pred_check_branch
      %15 = sbr.rel (0) target = $region13
    $region12: #{tpu_custom_call.1} parent=1 // pred_region
      _
    $region13: #{tpu_custom_call.1} parent=1 // pred_fallthru
      _
    // Predicated region
    $region14: #{tpu_custom_call.1} parent=1 // pred_check
      _
    $region15: #{tpu_custom_call.1} parent=1 // pred_check_branch
      %17 = sbr.rel (0) target = $region17
    $region16: #{tpu_custom_call.1} parent=1 // pred_region
      _
    $region17: #{tpu_custom_call.1} parent=1 // pred_fallthru
      _
    %v18 = vld [vmem:[%s0] sm:$0xff]
    %v19 = vld [vmem:[%s1] sm:$0xf]
    %v20 = vld [vmem:[%s3] sm:$0x1]
    %22 = vset.pattern.permute.xlu0 0
    %23 = vperm.xlu0 %22, %v18
    %v24 = vpop.permute.xlu0 %23
    %v26 = vlaneseq
    %v27 = vshrl.u32 %v26, 7
    %v28 = vsub.s32 0, %v27
    %v29 = vrot.slane %v19, %v28
    %v30 = vmul.f32 %v24, %v29
    %v32 = vlaneseq
    %v33 = vshrl.u32 %v32, 7
    %v34 = vsub.s32 0, %v33
    %v35 = vrot.slane %v20, %v34
    %v37 = vadd.f32 %v35, %v30
    %38 = vset.pattern.permute.xlu0 1
    %39 = vperm.xlu0 %38, %v18
    %v40 = vpop.permute.xlu0 %39
    %v42 = vlaneseq
    %v43 = vshrl.u32 %v42, 7
    %v44 = vsub.s32 1, %v43
    %v45 = vrot.slane %v19, %v44
    %v46 = vmul.f32 %v40, %v45
    %v47 = vadd.f32 %v37, %v46
    %48 = vset.pattern.permute.xlu0 2
    %49 = vperm.xlu0 %48, %v18
    %v50 = vpop.permute.xlu0 %49
    %v52 = vlaneseq
    %v53 = vshrl.u32 %v52, 7
    %v54 = vsub.s32 2, %v53
    %v55 = vrot.slane %v19, %v54
    %v56 = vmul.f32 %v50, %v55
    %v57 = vadd.f32 %v47, %v56
    %58 = vset.pattern.permute.xlu0 3
    %59 = vperm.xlu0 %58, %v18
    %v60 = vpop.permute.xlu0 %59
    %v62 = vlaneseq
    %v63 = vshrl.u32 %v62, 7
    %v64 = vsub.s32 3, %v63
    %v65 = vrot.slane %v19, %v64
    %v66 = vmul.f32 %v60, %v65
    %v67 = vadd.f32 %v57, %v66
    %v68 = vld [vmem:[%s2] sm:$0x1]
    %v69 = vand.u32 2147483647, %v67
    %vm70 = vcmp.le.f32.partialorder %v69, 0.7853982
    %vm71 = vcmp.lt.s32.totalorder %v67, 0
    %v72 = vand.u32 %v67, 2139095040
    %v73 = vshrl.u32 %v72, 23
    %v74 = vsub.s32 %v73, 127
    %v75 = vand.u32 2147483647, %v67
    %v76 = vand.u32 %v75, 8388607
    %v77 = vor.u32 %v76, 8388608
    %v78 = vsub.s32 0, %v77
    %v79 = vadd.s32 %v74, 1
    %vm80 = vcmp.gt.s32.totalorder %v79, 0
    %v81 = vsel %vm80, %v79, 0
    %v82 = vshrl.u32 %v81, 5
    %v83 = vand.u32 %v81, 31
    %v84 = vsub.s32 32, %v83
    %v85 = vshrl.u32 683565275, %v84
    %v86 = vshll.u32 683565275, %v83
    %v87 = vshrl.u32 2475754826, %v84
    %v88 = vor.u32 %v86, %v87
    %v89 = vshll.u32 2475754826, %v83
    %v90 = vshrl.u32 2131351028, %v84
    %v91 = vor.u32 %v89, %v90
    %v92 = vshll.u32 2131351028, %v83
    %v93 = vshrl.u32 2102212464, %v84
    %v94 = vor.u32 %v92, %v93
    %v95 = vshll.u32 2102212464, %v83
    %v96 = vshrl.u32 920167782, %v84
    %v97 = vor.u32 %v95, %v96
    %v98 = vshll.u32 920167782, %v83
    %v99 = vshrl.u32 1326507024, %v84
    %v100 = vor.u32 %v98, %v99
    %vm101 = vcmp.lt.s32.totalorder %v82, 1
    %vm102 = vcmp.lt.s32.totalorder %v82, 2
    %vm103 = vcmp.lt.s32.totalorder %v82, 3
    %vm104 = vcmp.lt.s32.totalorder %v82, 4
    %v105 = vsel %vm101, %v85, %v88
    %v106 = vsel %vm104, %v94, 2102212464
    %v107 = vsel %vm103, %v91, %v106
    %v108 = vsel %vm102, %v105, %v107
    %v109 = vsel %vm101, %v88, %v91
    %v110 = vsel %vm104, %v97, 920167782
    %v111 = vsel %vm103, %v94, %v110
    %v112 = vsel %vm102, %v109, %v111
    %v113 = vsel %vm101, %v91, %v94
    %v114 = vsel %vm104, %v100, 1326507024
    %v115 = vsel %vm103, %v97, %v114
    %v116 = vsel %vm102, %v113, %v115
    %v117 = vshll.u32 %v77, 8
    %v118 = vmul.u32.u64.compose %v117, %v116
    %v119 = vextract.low.u32 %v118
    %v120 = vextract.high.u32 %v118
    %v121 = vmul.u32.u64.compose %v117, %v112
    %v122 = vextract.low.u32 %v121
    %v123 = vextract.high.u32 %v121
    %v124 = vmul.u32 %v117, %v108
    %v125 = vadd.s32 %v120, %v122
    %vm126 = vc.u32 %v120, %v122
    %v127 = vadd.s32 %v123, 1
    %v128 = vsel %vm126, %v127, %v123
    %v129 = vadd.s32 %v124, %v128
    %v130 = vadd.s32 %v129, 536870912
    %v131 = vshrl.u32 %v130, 30
    %v132 = vshll.u32 %v131, 30
    %v133 = vsub.s32 %v129, %v132
    %vm134 = vcmp.lt.s32.totalorder %v133, 0
    %v135 = vsub.s32 0, %v133
    %v136 = vsel %vm134, %v135, %v133
    %v137 = vclz %v136
    %v138 = vsub.s32 %v137, 2
    %vm139 = vcmp.gt.s32.totalorder 0, %v138
    %v140 = vsel %vm139, 0, %v138
    %v141 = vsub.s32 32, %v140
    %v142 = vshll.u32 %v133, %v140
    %v143 = vshrl.u32 %v125, %v141
    %v144 = vor.u32 %v142, %v143
    %v145 = vsub.s32 4294967266, %v140
    %v146 = vadd.s32 %v145, 127
    %v147 = vshll.u32 %v146, 23
    %v148 = vor.u32 4788187, %v147
    %v149 = vand.u32 2147483647, %v148
    %v151 = vcvt.s32.f32 %v144
    %v152 = vmul.f32 %v151, %v149
    %v153 = vxor.u32 %v152, 2147483648
    %v154 = vsel %vm71, %v153, %v152
    %v155 = vsub.s32 4, %v131
    %v156 = vsel %vm71, %v155, %v131
    %v157 = vsel %vm70, %v67, %v154
    %v158 = vsel %vm70, 0, %v156
    %v159 = vcosq.f32.pop %v157
    %v160 = vsinq.f32.pop %v157
    %vm161 = vweird.f32 %v67
    %v162 = vadd.s32 %v158, 3
    %v163 = vand.u32 %v162, 3
    %vm164 = vcmp.lt.s32.totalorder %v163, 2
    %vm165 = vcmp.eq.s32.totalorder %v163, 0
    %v166 = vxor.u32 %v160, 2147483648
    %v167 = vsel %vm165, %v159, %v166
    %vm168 = vcmp.eq.s32.totalorder %v163, 2
    %v169 = vxor.u32 %v159, 2147483648
    %v170 = vsel %vm168, %v169, %v160
    %v171 = vsel %vm164, %v167, %v170
    %v172 = vsel %vm161, nan, %v171
    %v174 = vlaneseq
    %v175 = vshrl.u32 %v174, 7
    %v176 = vsub.s32 0, %v175
    %v177 = vrot.slane %v68, %v176
    %v179 = vmul.f32 %v177, %v172
    %180 = vst [vmem:[#allocation2] sm:$0xff] %v179
    // Predicated region
    $region18: #{tpu_custom_call.1} parent=1 // pred_check
      _
    $region19: #{tpu_custom_call.1} parent=1 // pred_check_branch
      %182 = sbr.rel (0) target = $region21
    $region20: #{tpu_custom_call.1} parent=1 // pred_region
      %s184 = ssub.s32 128, 128
      %185 = vsyncadd [#allocation3], %s184
      %s187 = sshll.u32 [#allocation2], 4
      %s188 = int_to_ptr.vmem [resolvable:$true] %s187
      %190 = dma.vmem_to_hbm [thread:$0]  %s188, 128, %s4, [#allocation3]
    $region21: #{tpu_custom_call.1} parent=1 // pred_fallthru
      _
    // Predicated region
    $region22: #{tpu_custom_call.1} parent=1 // pred_check
      _
    $region23: #{tpu_custom_call.1} parent=1 // pred_check_branch
      %192 = sbr.rel (0) target = $region25
    $region24: #{tpu_custom_call.1} parent=1 // pred_region
      %193 = dma.done [#allocation3], 128
    $region25: #{tpu_custom_call.1} parent=1 // pred_fallthru
      _
    %194 = vsyncpa [#allocation3], 1

</llo_original>
